<compile_context>
chip_gen: v6e
topology: v6e:2x2x1
jax: 0.10.0
libtpu: 0.0.40
codegen_flags: <defaults>
</compile_context>

<pallas_src>
import functools
import math

import jax
import jax.numpy as jnp
from jax.experimental import pallas as pl
from jax.experimental.pallas import tpu as pltpu

# --- deterministic stand-ins for the gl.get_value(...) globals -------------
LBDA = 1.0          # lbda
S = 30.0            # self.s
M = 0.4             # self.m
EPS = 1e-7          # self.eps
LOSS_TYPE = "arcface"

IN_FEATURES = 2
OUT_FEATURES = 10

LANES = 128
SUBLANES = 8
MAX_TILE_SUBLANES = 2048   # 2048 * 128 = 262,144 batch elements per grid step

# Fixed "direct" weight from the module __init__: shape (10, 2).
_DIRECT_ROWS = [
    (1.0, 0.0), (0.809, 0.588), (0.309, 0.951), (-0.309, 0.951),
    (-0.809, 0.588), (-1.0, 0.0), (-0.809, -0.588), (-0.309, -0.951),
    (0.309, -0.951), (0.809, -0.588),
]
# S folded into the class weights: swf_c = S * wf_c comes out of two muls + add.
_SCALED_ROWS = [(S * w0, S * w1) for (w0, w1) in _DIRECT_ROWS]
DIRECT = jnp.array(_DIRECT_ROWS, dtype=jnp.float32)


def _soft_func(v):
    # f = -(x - 0.5) * (x < 0.5) + (x - 1) * (x > 1)
    return (jnp.where(v < 0.5, -(v - 0.5), 0.0)
            + jnp.where(v > 1.0, v - 1.0, 0.0))


def _round_up(a, b):
    return -(-a // b) * b


def _make_kernel(n_valid, ts, tile_elems):
    """n_valid: true batch size; ts: sublane rows per tile; tile_elems = ts*128."""
    cos_m = math.cos(M)
    sin_m = math.sin(M)
    inv_s = 1.0 / S
    inv_n = 1.0 / float(n_valid)
    half_lbda = LBDA * 0.5

    def kernel(x_ref, lab_ref, o_ref, acc_ref):
        p = pl.program_id(0)          # core / batch-half index ("parallel")
        j = pl.program_id(1)          # tile index within the half ("arbitrary")
        nj = pl.num_programs(1)

        @pl.when(j == 0)
        def _():
            acc_ref[...] = jnp.zeros_like(acc_ref)

        x0 = x_ref[0]                 # (ts, LANES) f32, batch on sublanes+lanes
        x1 = x_ref[1]                 # (ts, LANES)
        labels = lab_ref[...]         # (ts, LANES) i32

        # ---- norm & F.normalize(x, p=2, dim=1) via a single rsqrt ----
        sumsq = x0 * x0 + x1 * x1
        inv = jax.lax.rsqrt(jnp.maximum(sumsq, 1e-24))   # == 1 / max(||x||, 1e-12)
        norm = sumsq * inv                               # == ||x||_2 (0 for zero rows)
        softv = _soft_func(norm - 1.0)
        xn0 = x0 * inv
        xn1 = x1 * inv

        # ---- per-class loop, statically unrolled, S pre-folded into weights ----
        full_sum = jnp.zeros_like(x0)   # sum_c exp(S*wf_c)
        sel_swf = jnp.zeros_like(x0)    # S*wf at the label class
        sel_exp = jnp.zeros_like(x0)    # exp(S*wf) at the label class
        for c, (sw0, sw1) in enumerate(_SCALED_ROWS):
            swf = sw0 * xn0 + sw1 * xn1
            e = jnp.exp(swf)
            full_sum = full_sum + e
            match = labels == c
            sel_swf = jnp.where(match, swf, sel_swf)
            sel_exp = jnp.where(match, e, sel_exp)

        excl_sum = full_sum - sel_exp
        cos_t = jnp.clip(sel_swf * inv_s, -1.0 + EPS, 1.0 - EPS)

        if LOSS_TYPE == "cosface":
            numerator = S * (cos_t - M)
        elif LOSS_TYPE == "arcface":
            # s * cos(acos(c) + m) == s * (c*cos(m) - sqrt(1 - c^2)*sin(m))
            numerator = S * (cos_t * cos_m
                             - jnp.sqrt(jnp.maximum(1.0 - cos_t * cos_t, 0.0)) * sin_m)
        else:  # sphereface
            numerator = S * jnp.cos(M * jnp.arccos(cos_t))

        L = numerator - jnp.log(jnp.exp(numerator) + excl_sum)

        # combined per-element contribution: mean(t) == -mean(L) + lbda*mean(soft)/2
        t = half_lbda * softv - L

        tile_start = (p * nj + j) * tile_elems
        has_pad = tile_start + tile_elems > n_valid

        @pl.when(jnp.logical_not(has_pad))
        def _():
            acc_ref[...] += jnp.sum(t, axis=0, keepdims=True)

        @pl.when(has_pad)
        def _():
            row = jax.lax.broadcasted_iota(jnp.int32, (ts, LANES), 0)
            col = jax.lax.broadcasted_iota(jnp.int32, (ts, LANES), 1)
            idx = tile_start + row * LANES + col
            tm = jnp.where(idx < n_valid, t, 0.0)
            acc_ref[...] += jnp.sum(tm, axis=0, keepdims=True)

        @pl.when(j == nj - 1)
        def _():
            o_ref[0] = acc_ref[...] * inv_n   # per-core, per-lane partial of mean(t)

    return kernel


@functools.partial(jax.jit, static_argnames=("max_tile_sublanes",))
def angular_penalty_sm_loss(x, labels, max_tile_sublanes=MAX_TILE_SUBLANES):
    """x: (N, in_features) float; labels: (N,) int in [0, out_features)."""
    n = x.shape[0]

    # ---- tile / grid planning (all Python ints at trace time) ----
    per_core = -(-n // 2)                                  # ceil(n / 2)
    tile_elems = min(max_tile_sublanes * LANES,
                     _round_up(max(per_core, 1), SUBLANES * LANES))
    ts = tile_elems // LANES                               # sublane rows / tile (x8)
    n_pad = _round_up(n, 2 * tile_elems)
    nj = n_pad // (2 * tile_elems)                         # tiles per core
    n_rows = n_pad // LANES

    # ---- host layout: batch packed onto (sublane, lane); fused under this jit ----
    xt = jnp.pad(jnp.asarray(x, jnp.float32).T, ((0, 0), (0, n_pad - n)))
    xt = xt.reshape(IN_FEATURES, n_rows, LANES)
    lab = jnp.pad(jnp.asarray(labels, jnp.int32), (0, n_pad - n))
    lab = lab.reshape(n_rows, LANES)

    out = pl.pallas_call(
        _make_kernel(n, ts, tile_elems),
        out_shape=jax.ShapeDtypeStruct((2, 1, LANES), jnp.float32),
        grid_spec=pltpu.PrefetchScalarGridSpec(
            num_scalar_prefetch=0,
            grid=(2, nj),
            in_specs=[
                pl.BlockSpec((IN_FEATURES, ts, LANES),
                             lambda p, j: (0, p * nj + j, 0)),
                pl.BlockSpec((ts, LANES),
                             lambda p, j: (p * nj + j, 0)),
            ],
            out_specs=pl.BlockSpec((1, 1, LANES), lambda p, j: (p, 0, 0)),
            scratch_shapes=[
                pltpu.VMEM((1, LANES), jnp.float32),   # running per-lane sum of t
            ],
        ),
        compiler_params=pltpu.CompilerParams(
            dimension_semantics=("parallel", "arbitrary"),
            vmem_limit_bytes=32 * 1024 * 1024,         # safe on v5e/v6e/v7x
        ),
    )(xt, lab)
    # sum the two per-core partials (and the 128 lane partials) in plain JAX
    return jnp.sum(out)


def _reference(x, labels):
    # pure-JAX reference of the PyTorch forward, for a sanity check
    x = x.astype(jnp.float32)
    norm = jnp.linalg.norm(x, axis=1)
    softloss = LBDA * jnp.mean(_soft_func(norm - 1.0)) / 2.0
    xn = x / jnp.maximum(norm[:, None], 1e-12)
    wf = xn @ DIRECT.T
    cos_t = jnp.clip(wf[jnp.arange(x.shape[0]), labels], -1.0 + EPS, 1.0 - EPS)
    numerator = S * jnp.cos(jnp.arccos(cos_t) + M)
    onehot = jax.nn.one_hot(labels, OUT_FEATURES, dtype=jnp.float32)
    excl_sum = jnp.sum(jnp.exp(S * wf) * (1.0 - onehot), axis=1)
    L = numerator - jnp.log(jnp.exp(numerator) + excl_sum)
    return -jnp.mean(L) + softloss


if __name__ == "__main__":
    key = jax.random.PRNGKey(0)
    kx, kl, kx2, kl2 = jax.random.split(key, 4)

    # --- small demo batch (matches module's (N, in_features) input) ---
    N = 8
    x = jax.random.normal(kx, (N, IN_FEATURES), dtype=jnp.float32)
    labels = jax.random.randint(kl, (N,), 0, OUT_FEATURES, dtype=jnp.int32)

    loss = angular_penalty_sm_loss(x, labels)
    jax.block_until_ready(loss)
    ref = _reference(x, labels)
    assert jnp.isfinite(loss), "kernel produced non-finite loss"
    assert jnp.allclose(loss, ref, rtol=1e-4, atol=1e-4), (loss, ref)

    # --- secondary check: multi-tile path (accumulation over j, masked tail,
    #     both grid halves) using a small forced tile size ---
    N2 = 5000
    x2 = jax.random.normal(kx2, (N2, IN_FEATURES), dtype=jnp.float32)
    labels2 = jax.random.randint(kl2, (N2,), 0, OUT_FEATURES, dtype=jnp.int32)
    loss2 = angular_penalty_sm_loss(x2, labels2, max_tile_sublanes=8)
    jax.block_until_ready(loss2)
    ref2 = _reference(x2, labels2)
    assert jnp.isfinite(loss2), "kernel produced non-finite loss (multi-tile)"
    assert jnp.allclose(loss2, ref2, rtol=1e-3, atol=1e-3), (loss2, ref2)

    print("KERNEL_OK")
</pallas_src>

<mosaic_0001>
module attributes {stable_mosaic.version = 11 : i64} {
  func.func @kernel(%arg0: i32, %arg1: i32, %arg2: memref<2x8x128xf32, #tpu.memory_space<vmem>>, %arg3: memref<8x128xi32, #tpu.memory_space<vmem>>, %arg4: memref<1x1x128xf32, #tpu.memory_space<vmem>>, %arg5: memref<1x128xf32, #tpu.memory_space<vmem>>) attributes {dimension_semantics = [#tpu.dimension_semantics<parallel>, #tpu.dimension_semantics<arbitrary>], iteration_bounds = array<i64: 2, 1>, scalar_prefetch = 0 : i64, scratch_operands = 1 : i64, tpu.core_type = #tpu.core_type<tc>, window_params = [{transform_indices = @transform_0, window_bounds = array<i64: 2, 8, 128>}, {transform_indices = @transform_1, window_bounds = array<i64: 8, 128>}, {transform_indices = @transform_2, window_bounds = array<i64: 1, 1, 128>}]} {
    %c0_i32 = arith.constant 0 : i32
    %0 = arith.cmpi eq, %arg1, %c0_i32 : i32
    %1 = arith.extui %0 : i1 to i32
    %c0_i32_0 = arith.constant 0 : i32
    %2 = arith.cmpi ne, %1, %c0_i32_0 : i32
    scf.if %2 {
      %cst_55 = arith.constant 0.000000e+00 : f32
      %187 = vector.broadcast %cst_55 : f32 to vector<1x128xf32>
      %c0_56 = arith.constant 0 : index
      %c0_57 = arith.constant 0 : index
      %188 = vector.load %arg5[%c0_56, %c0_57] : memref<1x128xf32, #tpu.memory_space<vmem>>, vector<1x128xf32>
      tpu.vector_store %arg5[%c0_56, %c0_57], %187 {strides = array<i32>} : memref<1x128xf32, #tpu.memory_space<vmem>>, vector<1x128xf32>,
    } else {
    }
    %c0 = arith.constant 0 : index
    %c0_1 = arith.constant 0 : index
    %c0_2 = arith.constant 0 : index
    %3 = vector.load %arg2[%c0, %c0_1, %c0_2] : memref<2x8x128xf32, #tpu.memory_space<vmem>>, vector<1x8x128xf32>
    %4 = vector.shape_cast %3 : vector<1x8x128xf32> to vector<8x128xf32>
    %c1 = arith.constant 1 : index
    %c0_3 = arith.constant 0 : index
    %c0_4 = arith.constant 0 : index
    %5 = vector.load %arg2[%c1, %c0_3, %c0_4] : memref<2x8x128xf32, #tpu.memory_space<vmem>>, vector<1x8x128xf32>
    %6 = vector.shape_cast %5 : vector<1x8x128xf32> to vector<8x128xf32>
    %c0_5 = arith.constant 0 : index
    %c0_6 = arith.constant 0 : index
    %7 = vector.load %arg3[%c0_5, %c0_6] : memref<8x128xi32, #tpu.memory_space<vmem>>, vector<8x128xi32>
    %8 = arith.mulf %4, %4 : vector<8x128xf32>
    %9 = arith.mulf %6, %6 : vector<8x128xf32>
    %10 = arith.addf %8, %9 : vector<8x128xf32>
    %cst = arith.constant 1.000000e-24 : f32
    %11 = vector.broadcast %cst : f32 to vector<8x128xf32>
    %12 = arith.maximumf %10, %11 : vector<8x128xf32>
    %13 = math.rsqrt %12 : vector<8x128xf32>
    %14 = arith.mulf %10, %13 : vector<8x128xf32>
    %cst_7 = arith.constant 1.000000e+00 : f32
    %15 = vector.broadcast %cst_7 : f32 to vector<8x128xf32>
    %16 = arith.subf %14, %15 : vector<8x128xf32>
    %cst_8 = arith.constant 5.000000e-01 : f32
    %17 = vector.broadcast %cst_8 : f32 to vector<8x128xf32>
    %18 = arith.cmpf olt, %16, %17 : vector<8x128xf32>
    %cst_9 = arith.constant 5.000000e-01 : f32
    %19 = vector.broadcast %cst_9 : f32 to vector<8x128xf32>
    %20 = arith.subf %16, %19 : vector<8x128xf32>
    %cst_10 = arith.constant 0.000000e+00 : f32
    %21 = vector.broadcast %cst_10 : f32 to vector<8x128xf32>
    %22 = arith.subf %21, %20 : vector<8x128xf32>
    %cst_11 = arith.constant 0.000000e+00 : f32
    %23 = vector.broadcast %cst_11 : f32 to vector<8x128xf32>
    %24 = arith.select %18, %22, %23 : vector<8x128xi1>, vector<8x128xf32>
    %cst_12 = arith.constant 1.000000e+00 : f32
    %25 = vector.broadcast %cst_12 : f32 to vector<8x128xf32>
    %26 = arith.cmpf ogt, %16, %25 : vector<8x128xf32>
    %cst_13 = arith.constant 1.000000e+00 : f32
    %27 = vector.broadcast %cst_13 : f32 to vector<8x128xf32>
    %28 = arith.subf %16, %27 : vector<8x128xf32>
    %cst_14 = arith.constant 0.000000e+00 : f32
    %29 = vector.broadcast %cst_14 : f32 to vector<8x128xf32>
    %30 = arith.select %26, %28, %29 : vector<8x128xi1>, vector<8x128xf32>
    %31 = arith.addf %24, %30 : vector<8x128xf32>
    %32 = arith.mulf %4, %13 : vector<8x128xf32>
    %33 = arith.mulf %6, %13 : vector<8x128xf32>
    %cst_15 = arith.constant 0.000000e+00 : f32
    %34 = vector.broadcast %cst_15 : f32 to vector<8x128xf32>
    %cst_16 = arith.constant 0.000000e+00 : f32
    %35 = vector.broadcast %cst_16 : f32 to vector<8x128xf32>
    %cst_17 = arith.constant 0.000000e+00 : f32
    %36 = vector.broadcast %cst_17 : f32 to vector<8x128xf32>
    %cst_18 = arith.constant 3.000000e+01 : f32
    %37 = vector.broadcast %cst_18 : f32 to vector<8x128xf32>
    %38 = arith.mulf %37, %32 : vector<8x128xf32>
    %cst_19 = arith.constant 0.000000e+00 : f32
    %39 = vector.broadcast %cst_19 : f32 to vector<8x128xf32>
    %40 = arith.mulf %39, %33 : vector<8x128xf32>
    %41 = arith.addf %38, %40 : vector<8x128xf32>
    %42 = math.exp %41 : vector<8x128xf32>
    %43 = arith.addf %34, %42 : vector<8x128xf32>
    %c0_i32_20 = arith.constant 0 : i32
    %44 = vector.broadcast %c0_i32_20 : i32 to vector<8x128xi32>
    %45 = arith.cmpi eq, %7, %44 : vector<8x128xi32>
    %46 = arith.select %45, %41, %35 : vector<8x128xi1>, vector<8x128xf32>
    %47 = arith.select %45, %42, %36 : vector<8x128xi1>, vector<8x128xf32>
    %cst_21 = arith.constant 2.427000e+01 : f32
    %48 = vector.broadcast %cst_21 : f32 to vector<8x128xf32>
    %49 = arith.mulf %48, %32 : vector<8x128xf32>
    %cst_22 = arith.constant 1.764000e+01 : f32
    %50 = vector.broadcast %cst_22 : f32 to vector<8x128xf32>
    %51 = arith.mulf %50, %33 : vector<8x128xf32>
    %52 = arith.addf %49, %51 : vector<8x128xf32>
    %53 = math.exp %52 : vector<8x128xf32>
    %54 = arith.addf %43, %53 : vector<8x128xf32>
    %c1_i32 = arith.constant 1 : i32
    %55 = vector.broadcast %c1_i32 : i32 to vector<8x128xi32>
    %56 = arith.cmpi eq, %7, %55 : vector<8x128xi32>
    %57 = arith.select %56, %52, %46 : vector<8x128xi1>, vector<8x128xf32>
    %58 = arith.select %56, %53, %47 : vector<8x128xi1>, vector<8x128xf32>
    %cst_23 = arith.constant 9.270000e+00 : f32
    %59 = vector.broadcast %cst_23 : f32 to vector<8x128xf32>
    %60 = arith.mulf %59, %32 : vector<8x128xf32>
    %cst_24 = arith.constant 2.853000e+01 : f32
    %61 = vector.broadcast %cst_24 : f32 to vector<8x128xf32>
    %62 = arith.mulf %61, %33 : vector<8x128xf32>
    %63 = arith.addf %60, %62 : vector<8x128xf32>
    %64 = math.exp %63 : vector<8x128xf32>
    %65 = arith.addf %54, %64 : vector<8x128xf32>
    %c2_i32 = arith.constant 2 : i32
    %66 = vector.broadcast %c2_i32 : i32 to vector<8x128xi32>
    %67 = arith.cmpi eq, %7, %66 : vector<8x128xi32>
    %68 = arith.select %67, %63, %57 : vector<8x128xi1>, vector<8x128xf32>
    %69 = arith.select %67, %64, %58 : vector<8x128xi1>, vector<8x128xf32>
    %cst_25 = arith.constant -9.270000e+00 : f32
    %70 = vector.broadcast %cst_25 : f32 to vector<8x128xf32>
    %71 = arith.mulf %70, %32 : vector<8x128xf32>
    %cst_26 = arith.constant 2.853000e+01 : f32
    %72 = vector.broadcast %cst_26 : f32 to vector<8x128xf32>
    %73 = arith.mulf %72, %33 : vector<8x128xf32>
    %74 = arith.addf %71, %73 : vector<8x128xf32>
    %75 = math.exp %74 : vector<8x128xf32>
    %76 = arith.addf %65, %75 : vector<8x128xf32>
    %c3_i32 = arith.constant 3 : i32
    %77 = vector.broadcast %c3_i32 : i32 to vector<8x128xi32>
    %78 = arith.cmpi eq, %7, %77 : vector<8x128xi32>
    %79 = arith.select %78, %74, %68 : vector<8x128xi1>, vector<8x128xf32>
    %80 = arith.select %78, %75, %69 : vector<8x128xi1>, vector<8x128xf32>
    %cst_27 = arith.constant -2.427000e+01 : f32
    %81 = vector.broadcast %cst_27 : f32 to vector<8x128xf32>
    %82 = arith.mulf %81, %32 : vector<8x128xf32>
    %cst_28 = arith.constant 1.764000e+01 : f32
    %83 = vector.broadcast %cst_28 : f32 to vector<8x128xf32>
    %84 = arith.mulf %83, %33 : vector<8x128xf32>
    %85 = arith.addf %82, %84 : vector<8x128xf32>
    %86 = math.exp %85 : vector<8x128xf32>
    %87 = arith.addf %76, %86 : vector<8x128xf32>
    %c4_i32 = arith.constant 4 : i32
    %88 = vector.broadcast %c4_i32 : i32 to vector<8x128xi32>
    %89 = arith.cmpi eq, %7, %88 : vector<8x128xi32>
    %90 = arith.select %89, %85, %79 : vector<8x128xi1>, vector<8x128xf32>
    %91 = arith.select %89, %86, %80 : vector<8x128xi1>, vector<8x128xf32>
    %cst_29 = arith.constant -3.000000e+01 : f32
    %92 = vector.broadcast %cst_29 : f32 to vector<8x128xf32>
    %93 = arith.mulf %92, %32 : vector<8x128xf32>
    %cst_30 = arith.constant 0.000000e+00 : f32
    %94 = vector.broadcast %cst_30 : f32 to vector<8x128xf32>
    %95 = arith.mulf %94, %33 : vector<8x128xf32>
    %96 = arith.addf %93, %95 : vector<8x128xf32>
    %97 = math.exp %96 : vector<8x128xf32>
    %98 = arith.addf %87, %97 : vector<8x128xf32>
    %c5_i32 = arith.constant 5 : i32
    %99 = vector.broadcast %c5_i32 : i32 to vector<8x128xi32>
    %100 = arith.cmpi eq, %7, %99 : vector<8x128xi32>
    %101 = arith.select %100, %96, %90 : vector<8x128xi1>, vector<8x128xf32>
    %102 = arith.select %100, %97, %91 : vector<8x128xi1>, vector<8x128xf32>
    %cst_31 = arith.constant -2.427000e+01 : f32
    %103 = vector.broadcast %cst_31 : f32 to vector<8x128xf32>
    %104 = arith.mulf %103, %32 : vector<8x128xf32>
    %cst_32 = arith.constant -1.764000e+01 : f32
    %105 = vector.broadcast %cst_32 : f32 to vector<8x128xf32>
    %106 = arith.mulf %105, %33 : vector<8x128xf32>
    %107 = arith.addf %104, %106 : vector<8x128xf32>
    %108 = math.exp %107 : vector<8x128xf32>
    %109 = arith.addf %98, %108 : vector<8x128xf32>
    %c6_i32 = arith.constant 6 : i32
    %110 = vector.broadcast %c6_i32 : i32 to vector<8x128xi32>
    %111 = arith.cmpi eq, %7, %110 : vector<8x128xi32>
    %112 = arith.select %111, %107, %101 : vector<8x128xi1>, vector<8x128xf32>
    %113 = arith.select %111, %108, %102 : vector<8x128xi1>, vector<8x128xf32>
    %cst_33 = arith.constant -9.270000e+00 : f32
    %114 = vector.broadcast %cst_33 : f32 to vector<8x128xf32>
    %115 = arith.mulf %114, %32 : vector<8x128xf32>
    %cst_34 = arith.constant -2.853000e+01 : f32
    %116 = vector.broadcast %cst_34 : f32 to vector<8x128xf32>
    %117 = arith.mulf %116, %33 : vector<8x128xf32>
    %118 = arith.addf %115, %117 : vector<8x128xf32>
    %119 = math.exp %118 : vector<8x128xf32>
    %120 = arith.addf %109, %119 : vector<8x128xf32>
    %c7_i32 = arith.constant 7 : i32
    %121 = vector.broadcast %c7_i32 : i32 to vector<8x128xi32>
    %122 = arith.cmpi eq, %7, %121 : vector<8x128xi32>
    %123 = arith.select %122, %118, %112 : vector<8x128xi1>, vector<8x128xf32>
    %124 = arith.select %122, %119, %113 : vector<8x128xi1>, vector<8x128xf32>
    %cst_35 = arith.constant 9.270000e+00 : f32
    %125 = vector.broadcast %cst_35 : f32 to vector<8x128xf32>
    %126 = arith.mulf %125, %32 : vector<8x128xf32>
    %cst_36 = arith.constant -2.853000e+01 : f32
    %127 = vector.broadcast %cst_36 : f32 to vector<8x128xf32>
    %128 = arith.mulf %127, %33 : vector<8x128xf32>
    %129 = arith.addf %126, %128 : vector<8x128xf32>
    %130 = math.exp %129 : vector<8x128xf32>
    %131 = arith.addf %120, %130 : vector<8x128xf32>
    %c8_i32 = arith.constant 8 : i32
    %132 = vector.broadcast %c8_i32 : i32 to vector<8x128xi32>
    %133 = arith.cmpi eq, %7, %132 : vector<8x128xi32>
    %134 = arith.select %133, %129, %123 : vector<8x128xi1>, vector<8x128xf32>
    %135 = arith.select %133, %130, %124 : vector<8x128xi1>, vector<8x128xf32>
    %cst_37 = arith.constant 2.427000e+01 : f32
    %136 = vector.broadcast %cst_37 : f32 to vector<8x128xf32>
    %137 = arith.mulf %136, %32 : vector<8x128xf32>
    %cst_38 = arith.constant -1.764000e+01 : f32
    %138 = vector.broadcast %cst_38 : f32 to vector<8x128xf32>
    %139 = arith.mulf %138, %33 : vector<8x128xf32>
    %140 = arith.addf %137, %139 : vector<8x128xf32>
    %141 = math.exp %140 : vector<8x128xf32>
    %142 = arith.addf %131, %141 : vector<8x128xf32>
    %c9_i32 = arith.constant 9 : i32
    %143 = vector.broadcast %c9_i32 : i32 to vector<8x128xi32>
    %144 = arith.cmpi eq, %7, %143 : vector<8x128xi32>
    %145 = arith.select %144, %140, %134 : vector<8x128xi1>, vector<8x128xf32>
    %146 = arith.select %144, %141, %135 : vector<8x128xi1>, vector<8x128xf32>
    %147 = arith.subf %142, %146 : vector<8x128xf32>
    %cst_39 = arith.constant 0.0333333351 : f32
    %148 = vector.broadcast %cst_39 : f32 to vector<8x128xf32>
    %149 = arith.mulf %145, %148 : vector<8x128xf32>
    %cst_40 = arith.constant -0.99999988 : f32
    %cst_41 = arith.constant 0.99999988 : f32
    %150 = vector.broadcast %cst_40 : f32 to vector<8x128xf32>
    %151 = arith.maximumf %150, %149 : vector<8x128xf32>
    %152 = vector.broadcast %cst_41 : f32 to vector<8x128xf32>
    %153 = arith.minimumf %152, %151 : vector<8x128xf32>
    %cst_42 = arith.constant 0.921060979 : f32
    %154 = vector.broadcast %cst_42 : f32 to vector<8x128xf32>
    %155 = arith.mulf %153, %154 : vector<8x128xf32>
    %156 = arith.mulf %153, %153 : vector<8x128xf32>
    %cst_43 = arith.constant 1.000000e+00 : f32
    %157 = vector.broadcast %cst_43 : f32 to vector<8x128xf32>
    %158 = arith.subf %157, %156 : vector<8x128xf32>
    %cst_44 = arith.constant 0.000000e+00 : f32
    %159 = vector.broadcast %cst_44 : f32 to vector<8x128xf32>
    %160 = arith.maximumf %158, %159 : vector<8x128xf32>
    %161 = math.sqrt %160 : vector<8x128xf32>
    %cst_45 = arith.constant 0.389418334 : f32
    %162 = vector.broadcast %cst_45 : f32 to vector<8x128xf32>
    %163 = arith.mulf %161, %162 : vector<8x128xf32>
    %164 = arith.subf %155, %163 : vector<8x128xf32>
    %cst_46 = arith.constant 3.000000e+01 : f32
    %165 = vector.broadcast %cst_46 : f32 to vector<8x128xf32>
    %166 = arith.mulf %165, %164 : vector<8x128xf32>
    %167 = math.exp %166 : vector<8x128xf32>
    %168 = arith.addf %167, %147 : vector<8x128xf32>
    %169 = math.log %168 : vector<8x128xf32>
    %170 = arith.subf %166, %169 : vector<8x128xf32>
    %cst_47 = arith.constant 5.000000e-01 : f32
    %171 = vector.broadcast %cst_47 : f32 to vector<8x128xf32>
    %172 = arith.mulf %171, %31 : vector<8x128xf32>
    %173 = arith.subf %172, %170 : vector<8x128xf32>
    %c1_i32_48 = arith.constant 1 : i32
    %174 = arith.muli %arg0, %c1_i32_48 : i32
    %175 = arith.addi %174, %arg1 : i32
    %c1024_i32 = arith.constant 1024 : i32
    %176 = arith.muli %175, %c1024_i32 : i32
    %c1024_i32_49 = arith.constant 1024 : i32
    %177 = arith.addi %176, %c1024_i32_49 : i32
    %c8_i32_50 = arith.constant 8 : i32
    %178 = arith.cmpi sgt, %177, %c8_i32_50 : i32
    %true = arith.constant true
    %179 = arith.xori %178, %true : i1
    %180 = arith.extui %179 : i1 to i32
    %c0_i32_51 = arith.constant 0 : i32
    %181 = arith.cmpi ne, %180, %c0_i32_51 : i32
    scf.if %181 {
      %c0_55 = arith.constant 0 : index
      %c0_56 = arith.constant 0 : index
      %187 = vector.load %arg5[%c0_55, %c0_56] : memref<1x128xf32, #tpu.memory_space<vmem>>, vector<1x128xf32>
      %cst_57 = arith.constant dense<0.000000e+00> : vector<128xf32>
      %188 = vector.multi_reduction <add>, %173, %cst_57 [0] : vector<8x128xf32> to vector<128xf32>
      %189 = vector.shape_cast %188 : vector<128xf32> to vector<1x128xf32>
      %190 = arith.addf %187, %189 : vector<1x128xf32>
      %c0_58 = arith.constant 0 : index
      %c0_59 = arith.constant 0 : index
      %191 = vector.load %arg5[%c0_58, %c0_59] : memref<1x128xf32, #tpu.memory_space<vmem>>, vector<1x128xf32>
      tpu.vector_store %arg5[%c0_58, %c0_59], %190 {strides = array<i32>} : memref<1x128xf32, #tpu.memory_space<vmem>>, vector<1x128xf32>,
    } else {
    }
    %182 = arith.extui %178 : i1 to i32
    %c0_i32_52 = arith.constant 0 : i32
    %183 = arith.cmpi ne, %182, %c0_i32_52 : i32
    scf.if %183 {
      %187 = tpu.iota {dimensions = array<i32: 0>} : vector<8x128xi32>
      %188 = tpu.iota {dimensions = array<i32: 1>} : vector<8x128xi32>
      %c128_i32 = arith.constant 128 : i32
      %189 = vector.broadcast %c128_i32 : i32 to vector<8x128xi32>
      %190 = arith.muli %187, %189 : vector<8x128xi32>
      %191 = vector.broadcast %176 : i32 to vector<8x128xi32>
      %192 = arith.addi %191, %190 : vector<8x128xi32>
      %193 = arith.addi %192, %188 : vector<8x128xi32>
      %c8_i32_55 = arith.constant 8 : i32
      %194 = vector.broadcast %c8_i32_55 : i32 to vector<8x128xi32>
      %195 = arith.cmpi slt, %193, %194 : vector<8x128xi32>
      %cst_56 = arith.constant 0.000000e+00 : f32
      %196 = vector.broadcast %cst_56 : f32 to vector<8x128xf32>
      %197 = arith.select %195, %173, %196 : vector<8x128xi1>, vector<8x128xf32>
      %c0_57 = arith.constant 0 : index
      %c0_58 = arith.constant 0 : index
      %198 = vector.load %arg5[%c0_57, %c0_58] : memref<1x128xf32, #tpu.memory_space<vmem>>, vector<1x128xf32>
      %cst_59 = arith.constant dense<0.000000e+00> : vector<128xf32>
      %199 = vector.multi_reduction <add>, %197, %cst_59 [0] : vector<8x128xf32> to vector<128xf32>
      %200 = vector.shape_cast %199 : vector<128xf32> to vector<1x128xf32>
      %201 = arith.addf %198, %200 : vector<1x128xf32>
      %c0_60 = arith.constant 0 : index
      %c0_61 = arith.constant 0 : index
      %202 = vector.load %arg5[%c0_60, %c0_61] : memref<1x128xf32, #tpu.memory_space<vmem>>, vector<1x128xf32>
      tpu.vector_store %arg5[%c0_60, %c0_61], %201 {strides = array<i32>} : memref<1x128xf32, #tpu.memory_space<vmem>>, vector<1x128xf32>,
    } else {
    }
    %c0_i32_53 = arith.constant 0 : i32
    %184 = arith.cmpi eq, %arg1, %c0_i32_53 : i32
    %185 = arith.extui %184 : i1 to i32
    %c0_i32_54 = arith.constant 0 : i32
    %186 = arith.cmpi ne, %185, %c0_i32_54 : i32
    scf.if %186 {
      %c0_55 = arith.constant 0 : index
      %c0_56 = arith.constant 0 : index
      %187 = vector.load %arg5[%c0_55, %c0_56] : memref<1x128xf32, #tpu.memory_space<vmem>>, vector<1x128xf32>
      %cst_57 = arith.constant 1.250000e-01 : f32
      %188 = vector.broadcast %cst_57 : f32 to vector<1x128xf32>
      %189 = arith.mulf %187, %188 : vector<1x128xf32>
      %c0_58 = arith.constant 0 : index
      %c0_59 = arith.constant 0 : index
      %c0_60 = arith.constant 0 : index
      %190 = vector.load %arg4[%c0_58, %c0_59, %c0_60] : memref<1x1x128xf32, #tpu.memory_space<vmem>>, vector<1x1x128xf32>
      %191 = vector.shape_cast %190 : vector<1x1x128xf32> to vector<1x128xf32>
      %192 = vector.shape_cast %189 : vector<1x128xf32> to vector<1x1x128xf32>
      tpu.vector_store %arg4[%c0_58, %c0_59, %c0_60], %192 {strides = array<i32>} : memref<1x1x128xf32, #tpu.memory_space<vmem>>, vector<1x1x128xf32>,
    } else {
    }
    return
  }
  func.func @transform_0(%arg0: i32, %arg1: i32) -> (i32, i32, i32) {
    %c1_i32 = arith.constant 1 : i32
    %0 = arith.muli %arg0, %c1_i32 : i32
    %1 = arith.addi %0, %arg1 : i32
    %c0_i32 = arith.constant 0 : i32
    %c0_i32_0 = arith.constant 0 : i32
    %c0_i32_1 = arith.constant 0 : i32
    return %c0_i32, %1, %c0_i32_0 : i32, i32, i32
  }
  func.func @transform_1(%arg0: i32, %arg1: i32) -> (i32, i32) {
    %c1_i32 = arith.constant 1 : i32
    %0 = arith.muli %arg0, %c1_i32 : i32
    %1 = arith.addi %0, %arg1 : i32
    %c0_i32 = arith.constant 0 : i32
    %c0_i32_0 = arith.constant 0 : i32
    return %1, %c0_i32 : i32, i32
  }
  func.func @transform_2(%arg0: i32, %arg1: i32) -> (i32, i32, i32) {
    %c0_i32 = arith.constant 0 : i32
    %c0_i32_0 = arith.constant 0 : i32
    %c0_i32_1 = arith.constant 0 : i32
    return %arg0, %c0_i32, %c0_i32_0 : i32, i32, i32
  }
}

</mosaic_0001>

<llo_original>
// kernel: angular_penalty_sm_loss.1
$region0: #{angular_penalty_sm_loss.1}
  #allocation0 [shape = 'u32[]', space=smem, size = 0x4, offset = 0x4, fixed_abs, tag = 'smem constant byte address 0x4 - core index']
  #allocation1 [shape = 'u32[144,128]{1,0:T(1,128)}', space=vmem, size = 0x12000, scoped, tag = 'internal scratch']
  #allocation2 [shape = 'f32[1,128]{1,0:T(1,128)}', space=vmem, size = 0x200, scoped, tag = 'scratch operand']
  %s0 = inlined_call_operand.vmem [shape: f32[2,16,128], index: 0, kind: input, shape index: {}]
  %s1 = inlined_call_operand.vmem [shape: s32[16,128], index: 1, kind: input, shape index: {}]
  %s2 = inlined_call_operand.vmem [shape: f32[2,1,128], index: 2, kind: output, shape index: {}]
  %s3 = sld [smem:[#allocation0]]
  $region95: #{angular_penalty_sm_loss.1} parent=0
    _
  %s5 = ssub.s32 1, %s3
  %s6 = scalar_select 0, %s5, %s3
  $region1: #{angular_penalty_sm_loss.1} parent=0
    #allocation3 [shape = 'u8[16384]{0}', space=vmem, size = 0x4000, scoped, tag = 'input window, operand 0']
    loop: start=0, step=1, limit=4
    $region2: #{angular_penalty_sm_loss.1} parent=1 // loop_pre_header
      _
    $region3: #{angular_penalty_sm_loss.1} parent=1 // loop_header
      %s8 = sphi 0, %s12
      %p9 = scmp.ge.s32.totalorder %s8, 4
      %s15 = sphi 0, %s27
      %s16 = sphi 0, %s23
      %s17 = sphi 0, %s15
      %s18 = sphi 0, %s16
      %s19 = sphi 0, %s17
      %s20 = sphi 0, %s18
      %s32 = sphi 0, %s34
      %s35 = sphi 0, %s32
      %s36 = sphi 0, %s35
      %s52 = sphi 0, %s36
      %s60 = sphi 0, %s62
      %s63 = sphi 0, %s60
      %s64 = sphi 0, %s63
      %s80 = sphi 0, %s64
      %s86 = sphi 0, %s88
      %s89 = sphi 0, %s86
      %s90 = sphi 0, %s89
      %s106 = sphi 0, %s90
    $region4: #{angular_penalty_sm_loss.1} parent=1 // loop_header_branch
      %11 = sbr.rel (%p9) target = $region8
    $region5: #{angular_penalty_sm_loss.1} parent=1 // loop_body
      %s13 = ssub.s32 %s8, 1
      %s14 = ssub.s32 %s8, 2
      %s21 = sadd.s32 1, %s16
      %p22 = scmp.ge.s32.totalorder %s21, 1
      %s23 = scalar_select %p22, 0, %s21
      %s24 = sadd.s32 1, %s15
      %s25 = scalar_select %p22, %s24, %s15
      %p26 = scmp.ge.s32.totalorder %s25, 2
      %s27 = scalar_select %p26, 0, %s25
      %s28 = sadd.s32 %s15, %s16
      %s29 = sadd.s32 %s27, %s23
      %s30 = ssub.s32 %s28, %s29
      %p31 = scmp.eq.s32.totalorder %s30, 0
      %s33 = sadd.s32 %s32, 1
      %s34 = scalar_select %p31, %s32, %s33
      %p37 = pneg %p31
      %p38 = scmp.eq.s32.totalorder %s8, 1
      %p39 = por %p37, %p38
      %p40 = scmp.ne.s32.totalorder %s32, %s35
      %p41 = scmp.eq.s32.totalorder %s8, 0
      %p42 = por %p40, %p41
      %p43 = scmp.ne.s32.totalorder %s32, %s35
      %p44 = scmp.eq.s32.totalorder %s13, 1
      %p45 = por %p43, %p44
      %p46 = scmp.ne.s32.totalorder %s35, %s36
      %p47 = scmp.eq.s32.totalorder %s13, 0
      %p48 = por %p46, %p47
      %p49 = scmp.ne.s32.totalorder %s35, %s36
      %p50 = scmp.eq.s32.totalorder %s14, 1
      %p51 = por %p49, %p50
      %p53 = scmp.ne.s32.totalorder %s36, %s52
      %p54 = scmp.eq.s32.totalorder %s14, 0
      %p55 = por %p53, %p54
      %s56 = sadd.s32 %s15, %s16
      %s57 = sadd.s32 %s27, %s23
      %s58 = ssub.s32 %s56, %s57
      %p59 = scmp.eq.s32.totalorder %s58, 0
      %s61 = sadd.s32 %s60, 1
      %s62 = scalar_select %p59, %s60, %s61
      %p65 = pneg %p59
      %p66 = scmp.eq.s32.totalorder %s8, 1
      %p67 = por %p65, %p66
      %p68 = scmp.ne.s32.totalorder %s60, %s63
      %p69 = scmp.eq.s32.totalorder %s8, 0
      %p70 = por %p68, %p69
      %p71 = scmp.ne.s32.totalorder %s60, %s63
      %p72 = scmp.eq.s32.totalorder %s13, 1
      %p73 = por %p71, %p72
      %p74 = scmp.ne.s32.totalorder %s63, %s64
      %p75 = scmp.eq.s32.totalorder %s13, 0
      %p76 = por %p74, %p75
      %p77 = scmp.ne.s32.totalorder %s63, %s64
      %p78 = scmp.eq.s32.totalorder %s14, 1
      %p79 = por %p77, %p78
      %p81 = scmp.ne.s32.totalorder %s64, %s80
      %p82 = scmp.eq.s32.totalorder %s14, 0
      %p83 = por %p81, %p82
      %s84 = ssub.s32 %s15, %s27
      %p85 = scmp.eq.s32.totalorder %s84, 0
      %s87 = sadd.s32 %s86, 1
      %s88 = scalar_select %p85, %s86, %s87
      %p91 = pneg %p85
      %p92 = scmp.eq.s32.totalorder %s8, 1
      %p93 = por %p91, %p92
      %p94 = scmp.ne.s32.totalorder %s86, %s89
      %p95 = scmp.eq.s32.totalorder %s8, 0
      %p96 = por %p94, %p95
      %p97 = scmp.ne.s32.totalorder %s86, %s89
      %p98 = scmp.eq.s32.totalorder %s13, 1
      %p99 = por %p97, %p98
      %p100 = scmp.ne.s32.totalorder %s89, %s90
      %p101 = scmp.eq.s32.totalorder %s13, 0
      %p102 = por %p100, %p101
      %p103 = scmp.ne.s32.totalorder %s89, %s90
      %p104 = scmp.eq.s32.totalorder %s14, 1
      %p105 = por %p103, %p104
      %p107 = scmp.ne.s32.totalorder %s90, %s106
      %p108 = scmp.eq.s32.totalorder %s14, 0
      %p109 = por %p107, %p108
      %p110 = scmp.le.s32.totalorder 1, %s8
      %p111 = scmp.lt.s32.totalorder %s8, 3
      %p112 = pnand %p110, %p111
      %p113 = pneg %p112
      // Predicated region
      $region9: #{angular_penalty_sm_loss.1} parent=5 // pred_check
        _
      $region10: #{angular_penalty_sm_loss.1} parent=5 // pred_check_branch
        %115 = sbr.rel (%p112) target = $region12
      $region11: #{angular_penalty_sm_loss.1} parent=5 // pred_region
        %s116 = ssub.s32 %s8, 1
      $region12: #{angular_penalty_sm_loss.1} parent=5 // pred_fallthru
        _
      %p117 = scmp.lt.s32.totalorder %s8, 2
      // Predicated region
      $region13: #{angular_penalty_sm_loss.1} parent=5 // pred_check
        %p118 = pneg %p117
      $region14: #{angular_penalty_sm_loss.1} parent=5 // pred_check_branch
        %120 = sbr.rel (%p118) target = $region16
      $region15: #{angular_penalty_sm_loss.1} parent=5 // pred_region
        // Predicated region
        $region17: #{angular_penalty_sm_loss.1} parent=15 // pred_check
          %p121 = pneg %p42
        $region18: #{angular_penalty_sm_loss.1} parent=15 // pred_check_branch
          %123 = sbr.rel (%p121) target = $region20
        $region19: #{angular_penalty_sm_loss.1} parent=15 // pred_region
          %s124 = sand.u32 %s32, 1
          %s125 = sand.u32 %s32, 1
          %s126 = smul.addr %s125, 16
          %s127 = scalar_lea.vmem [#allocation3], %s126
          %s128 = sadd.s32 %s15, %s16
          %s129 = smul.addr %s128, 8
          %s130 = scalar_lea.vmem %s0, %s129
          // Predicated region
          $region21: #{angular_penalty_sm_loss.1} parent=19 // pred_check
            _
          $region22: #{angular_penalty_sm_loss.1} parent=19 // pred_check_branch
            %132 = sbr.rel (0) target = $region24
          $region23: #{angular_penalty_sm_loss.1} parent=19 // pred_region
            // Predicated region
            $region25: #{angular_penalty_sm_loss.1} parent=23 // pred_check
              _
            $region26: #{angular_penalty_sm_loss.1} parent=23 // pred_check_branch
              %134 = sbr.rel (0) target = $region28
            $region27: #{angular_penalty_sm_loss.1} parent=23 // pred_region
              // Predicated region
              $region40: #{angular_penalty_sm_loss.1} parent=27 // pred_check
                _
              $region41: #{angular_penalty_sm_loss.1} parent=27 // pred_check_branch
                %152 = sbr.rel (0) target = $region43
              $region42: #{angular_penalty_sm_loss.1} parent=27 // pred_region
                loop: start=0, step=1, limit=1
                $region44: #{angular_penalty_sm_loss.1} parent=42 // loop_pre_header
                  _
                $region45: #{angular_penalty_sm_loss.1} parent=42 // loop_header
                  %s154 = sphi 0, %s158
                  %p155 = scmp.ge.s32.totalorder %s154, 1
                  %s159 = sphi %s130, %s130
                  %s160 = sphi %s127, %s127
                $region46: #{angular_penalty_sm_loss.1} parent=42 // loop_header_branch
                  %157 = sbr.rel (%p155) target = $region50
                $region47: #{angular_penalty_sm_loss.1} parent=42 // loop_body
                  %v161 = vld [vmem:[%s159] sm:$0xff]
                  %162 = vst [vmem:[%s160] sm:$0xff] %v161
                  %v163 = vld [vmem:[%s159 + $0x10] sm:$0xff]
                  %164 = vst [vmem:[%s160 + $0x8] sm:$0xff] %v163
                $region48: #{angular_penalty_sm_loss.1} parent=42 // loop_footer
                  %s158 = sadd.s32 1, %s154
                $region49: #{angular_penalty_sm_loss.1} parent=42 // loop_footer_branch
                  %153 = sbr.rel target = $region45
                $region50: #{angular_penalty_sm_loss.1} parent=42 // loop_exit
                  _
              $region43: #{angular_penalty_sm_loss.1} parent=27 // pred_fallthru
                _
              // Predicated region
              $region51: #{angular_penalty_sm_loss.1} parent=27 // pred_check
                _
              $region52: #{angular_penalty_sm_loss.1} parent=27 // pred_check_branch
                %166 = sbr.rel target = $region54
              $region53: #{angular_penalty_sm_loss.1} parent=27 // pred_region
                _
              $region54: #{angular_penalty_sm_loss.1} parent=27 // pred_fallthru
                _
            $region28: #{angular_penalty_sm_loss.1} parent=23 // pred_fallthru
              _
            // Predicated region
            $region29: #{angular_penalty_sm_loss.1} parent=23 // pred_check
              _
            $region30: #{angular_penalty_sm_loss.1} parent=23 // pred_check_branch
              %136 = sbr.rel target = $region32
            $region31: #{angular_penalty_sm_loss.1} parent=23 // pred_region
              %s138 = ssub.s32 256, 1
              loop: start=0, step=1, limit=1
              $region33: #{angular_penalty_sm_loss.1} parent=31 // loop_pre_header
                _
              $region34: #{angular_penalty_sm_loss.1} parent=31 // loop_header
                %s140 = sphi 0, %s144
                %p141 = scmp.ge.s32.totalorder %s140, 1
                %s145 = sphi %s130, %s130
                %s146 = sphi %s127, %s127
              $region35: #{angular_penalty_sm_loss.1} parent=31 // loop_header_branch
                %143 = sbr.rel (%p141) target = $region39
              $region36: #{angular_penalty_sm_loss.1} parent=31 // loop_body
                %v147 = vld [vmem:[%s145] sm:%s138]
                %148 = vst [vmem:[%s146] sm:%s138] %v147
                %v149 = vld [vmem:[%s145 + $0x10] sm:%s138]
                %150 = vst [vmem:[%s146 + $0x8] sm:%s138] %v149
              $region37: #{angular_penalty_sm_loss.1} parent=31 // loop_footer
                %s144 = sadd.s32 1, %s140
              $region38: #{angular_penalty_sm_loss.1} parent=31 // loop_footer_branch
                %139 = sbr.rel target = $region34
              $region39: #{angular_penalty_sm_loss.1} parent=31 // loop_exit
                _
            $region32: #{angular_penalty_sm_loss.1} parent=23 // pred_fallthru
              _
          $region24: #{angular_penalty_sm_loss.1} parent=19 // pred_fallthru
            _
          %167 = vnop
        $region20: #{angular_penalty_sm_loss.1} parent=15 // pred_fallthru
          _
        // Predicated region
        $region55: #{angular_penalty_sm_loss.1} parent=15 // pred_check
          %p168 = pneg %p70
        $region56: #{angular_penalty_sm_loss.1} parent=15 // pred_check_branch
          %170 = sbr.rel (%p168) target = $region58
        $region57: #{angular_penalty_sm_loss.1} parent=15 // pred_region
          %s171 = sadd.s32 %s15, %s16
          %p172 = scmp.lt.s32.totalorder %s171, 1
          %s173 = scalar_select %p172, %s171, 1
          %s174 = smul.addr %s173, 8
          %s175 = scalar_lea.vmem %s1, %s174
          %s176 = sadd.s32 %s15, %s16
        $region58: #{angular_penalty_sm_loss.1} parent=15 // pred_fallthru
          _
      $region16: #{angular_penalty_sm_loss.1} parent=5 // pred_fallthru
        _
      %p177 = scmp.le.s32.totalorder 1, %s8
      %p178 = scmp.lt.s32.totalorder %s8, 3
      %p179 = pnand %p177, %p178
      %p180 = pneg %p179
      // Predicated region
      $region59: #{angular_penalty_sm_loss.1} parent=5 // pred_check
        _
      $region60: #{angular_penalty_sm_loss.1} parent=5 // pred_check_branch
        %182 = sbr.rel (%p179) target = $region62
      $region61: #{angular_penalty_sm_loss.1} parent=5 // pred_region
        %s183 = ssub.s32 %s8, 1
        %s184 = sand.u32 %s35, 1
        %s185 = sand.u32 %s35, 1
        %s186 = smul.addr %s185, 16
        %s187 = scalar_lea.vmem [#allocation3], %s186
        // Predicated region
        $region63: #{angular_penalty_sm_loss.1} parent=61 // pred_check
          %p188 = pneg %p48
        $region64: #{angular_penalty_sm_loss.1} parent=61 // pred_check_branch
          %190 = sbr.rel (%p188) target = $region66
        $region65: #{angular_penalty_sm_loss.1} parent=61 // pred_region
          _
        $region66: #{angular_penalty_sm_loss.1} parent=61 // pred_fallthru
          _
        %s191 = sand.u32 %s35, 1
        %s192 = sand.u32 %s35, 1
        %s193 = smul.addr %s192, 16
        %s194 = scalar_lea.vmem [#allocation3], %s193
        %p195 = pneg %p48
        %p196 = pneg %p45
        %s197 = sadd.s32 %s17, %s18
        %p198 = scmp.lt.s32.totalorder %s197, 1
        %s199 = scalar_select %p198, %s197, 1
        %s200 = smul.addr %s199, 8
        %s201 = scalar_lea.vmem %s1, %s200
        %p202 = pneg %p76
        %p203 = pneg %p73
        %p204 = pneg %p102
        %p205 = pneg %p99
        %p206 = scmp.lt.s32.totalorder %s17, 1
        %s207 = scalar_select %p206, %s17, 1
        %s208 = scalar_lea.vmem %s2, %s207
        %s209 = sadd.s32 %s17, %s18
        %s210 = sadd.s32 %s17, %s18
        %p211 = scmp.lt.s32.totalorder %s210, 1
        %s212 = scalar_select %p211, %s210, 1
        %s213 = smul.addr %s212, 8
        %s214 = scalar_lea.vmem %s1, %s213
        %s215 = sadd.s32 %s17, %s18
        %p216 = scmp.lt.s32.totalorder %s17, 1
        %s217 = scalar_select %p216, %s17, 1
        %s218 = scalar_lea.vmem %s2, %s217
        %p219 = scmp.eq.s32.totalorder %s18, 0
        // Predicated region
        $region67: #{angular_penalty_sm_loss.1} parent=61 // pred_check
          %p220 = pneg %p219
        $region68: #{angular_penalty_sm_loss.1} parent=61 // pred_check_branch
          %222 = sbr.rel (%p220) target = $region70
        $region69: #{angular_penalty_sm_loss.1} parent=61 // pred_region
          %223 = vst [vmem:[#allocation2] sm:$0x1] 0.0
        $region70: #{angular_penalty_sm_loss.1} parent=61 // pred_fallthru
          _
        %v224 = vld [vmem:[%s187] sm:$0xff]
        %s225 = scalar_lea.vmem %s187, 8 [#allocation3]
        %v226 = vld [vmem:[%s225] sm:$0xff]
        %v227 = vld [vmem:[%s214] sm:$0xff]
        %v228 = vmul.f32 %v224, %v224
        %v229 = vmul.f32 %v226, %v226
        %v230 = vadd.f32 %v228, %v229
        %v231 = vmax.f32 %v230, 1e-24
        %v232 = vrsqrt.pop %v231
        %v233 = vmul.f32 %v230, %v232
        %v234 = vsub.f32 %v233, 1.0
        %vm235 = vcmp.lt.f32.partialorder %v234, 0.5
        %v236 = vsub.f32 %v234, 0.5
        %v237 = vsub.f32 0.0, %v236
        %v238 = vsel %vm235, %v237, 0.0
        %vm239 = vcmp.gt.f32.partialorder %v234, 1.0
        %v240 = vsub.f32 %v234, 1.0
        %v241 = vsel %vm239, %v240, 0.0
        %v242 = vadd.f32 %v238, %v241
        %v243 = vmul.f32 %v224, %v232
        %v244 = vmul.f32 %v226, %v232
        %v245 = vmul.f32 %v243, 30.0
        %v246 = vmul.f32 %v244, 0.0
        %v247 = vadd.f32 %v245, %v246
        %v248 = vmul.f32 %v247, 1.442695
        %v249 = vpow.pop %v248
        %v250 = vadd.f32 %v249, 0.0
        %vm251 = vcmp.eq.s32.totalorder %v227, 0
        %v252 = vsel %vm251, %v247, 0.0
        %v253 = vsel %vm251, %v249, 0.0
        %v254 = vmul.f32 %v243, 24.27
        %v255 = vmul.f32 %v244, 17.64
        %v256 = vadd.f32 %v254, %v255
        %v257 = vmul.f32 %v256, 1.442695
        %v258 = vpow.pop %v257
        %v259 = vadd.f32 %v250, %v258
        %vm260 = vcmp.eq.s32.totalorder %v227, 1
        %v261 = vsel %vm260, %v256, %v252
        %v262 = vsel %vm260, %v258, %v253
        %v263 = vmul.f32 %v243, 9.27
        %v264 = vmul.f32 %v244, 28.53
        %v265 = vadd.f32 %v263, %v264
        %v266 = vmul.f32 %v265, 1.442695
        %v267 = vpow.pop %v266
        %v268 = vadd.f32 %v259, %v267
        %vm269 = vcmp.eq.s32.totalorder %v227, 2
        %v270 = vsel %vm269, %v265, %v261
        %v271 = vsel %vm269, %v267, %v262
        %v272 = vmul.f32 %v243, -9.27
        %v273 = vadd.f32 %v272, %v264
        %v274 = vmul.f32 %v273, 1.442695
        %v275 = vpow.pop %v274
        %v276 = vadd.f32 %v268, %v275
        %vm277 = vcmp.eq.s32.totalorder %v227, 3
        %v278 = vsel %vm277, %v273, %v270
        %v279 = vsel %vm277, %v275, %v271
        %v280 = vmul.f32 %v243, -24.27
        %v281 = vadd.f32 %v280, %v255
        %v282 = vmul.f32 %v281, 1.442695
        %v283 = vpow.pop %v282
        %v284 = vadd.f32 %v276, %v283
        %vm285 = vcmp.eq.s32.totalorder %v227, 4
        %v286 = vsel %vm285, %v281, %v278
        %v287 = vsel %vm285, %v283, %v279
        %v288 = vmul.f32 %v243, -30.0
        %v289 = vadd.f32 %v288, %v246
        %v290 = vmul.f32 %v289, 1.442695
        %v291 = vpow.pop %v290
        %v292 = vadd.f32 %v284, %v291
        %vm293 = vcmp.eq.s32.totalorder %v227, 5
        %v294 = vsel %vm293, %v289, %v286
        %v295 = vsel %vm293, %v291, %v287
        %v296 = vmul.f32 %v244, -17.64
        %v297 = vadd.f32 %v280, %v296
        %v298 = vmul.f32 %v297, 1.442695
        %v299 = vpow.pop %v298
        %v300 = vadd.f32 %v292, %v299
        %vm301 = vcmp.eq.s32.totalorder %v227, 6
        %v302 = vsel %vm301, %v297, %v294
        %v303 = vsel %vm301, %v299, %v295
        %v304 = vmul.f32 %v244, -28.53
        %v305 = vadd.f32 %v272, %v304
        %v306 = vmul.f32 %v305, 1.442695
        %v307 = vpow.pop %v306
        %v308 = vadd.f32 %v300, %v307
        %vm309 = vcmp.eq.s32.totalorder %v227, 7
        %v310 = vsel %vm309, %v305, %v302
        %v311 = vsel %vm309, %v307, %v303
        %v312 = vadd.f32 %v263, %v304
        %v313 = vmul.f32 %v312, 1.442695
        %v314 = vpow.pop %v313
        %v315 = vadd.f32 %v308, %v314
        %vm316 = vcmp.eq.s32.totalorder %v227, 8
        %v317 = vsel %vm316, %v312, %v310
        %v318 = vsel %vm316, %v314, %v311
        %v319 = vadd.f32 %v254, %v296
        %v320 = vmul.f32 %v319, 1.442695
        %v321 = vpow.pop %v320
        %v322 = vadd.f32 %v315, %v321
        %vm323 = vcmp.eq.s32.totalorder %v227, 9
        %v324 = vsel %vm323, %v319, %v317
        %v325 = vsel %vm323, %v321, %v318
        %v326 = vsub.f32 %v322, %v325
        %v327 = vmul.f32 %v324, 0.033333335
        %v328 = vmax.f32 %v327, -0.9999999
        %v329 = vmin.f32 %v328, 0.9999999
        %v330 = vmul.f32 %v329, 0.921061
        %v331 = vmul.f32 %v329, %v329
        %v332 = vsub.f32 1.0, %v331
        %v333 = vmax.f32 %v332, 0.0
        %v334 = vrsqrt.pop %v333
        %v335 = vmul.f32 %v333, %v334
        %vm336 = vcmp.eq.f32.partialorder %v333, inf
        %v337 = vsel %vm336, %v333, %v335
        %vm338 = vcmp.eq.f32.partialorder %v333, 0.0
        %v339 = vand.u32 %v333, 2147483648
        %v340 = vsel %vm338, %v339, %v337
        %v341 = vmul.f32 %v340, 0.38941833
        %v342 = vsub.f32 %v330, %v341
        %v343 = vmul.f32 %v342, 30.0
        %v344 = vmul.f32 %v343, 1.442695
        %v345 = vpow.pop %v344
        %v346 = vadd.f32 %v345, %v326
        %v347 = vlog2.pop %v346
        %v348 = vmul.f32 %v347, 0.6931472
        %v349 = vsub.f32 %v343, %v348
        %v350 = vmul.f32 %v242, 0.5
        %v351 = vsub.f32 %v350, %v349
        %s352 = sadd.s32 %s17, %s18
        %s353 = smul.u32 %s352, 1024
        %s354 = sadd.s32 %s353, 1024
        %p355 = scmp.gt.s32.totalorder %s354, 8
        %p356 = scmp.le.s32.totalorder %s354, 8
        // Predicated region
        $region71: #{angular_penalty_sm_loss.1} parent=61 // pred_check
          %p357 = pneg %p356
        $region72: #{angular_penalty_sm_loss.1} parent=61 // pred_check_branch
          %359 = sbr.rel (%p357) target = $region74
        $region73: #{angular_penalty_sm_loss.1} parent=61 // pred_region
          %v360 = vld [vmem:[#allocation2] sm:$0x1]
          %v361 = vrot.slane %v351, 4
          %v362 = vadd.f32 %v351, %v361
          %v363 = vrot.slane %v362, 2
          %v364 = vadd.f32 %v362, %v363
          %v365 = vrot.slane %v364, 1
          %v366 = vadd.f32 %v364, %v365
          %v367 = vadd.f32 %v360, %v366
          %368 = vst [vmem:[#allocation2] sm:$0x1] %v367
        $region74: #{angular_penalty_sm_loss.1} parent=61 // pred_fallthru
          _
        // Predicated region
        $region75: #{angular_penalty_sm_loss.1} parent=61 // pred_check
          %p369 = pneg %p355
        $region76: #{angular_penalty_sm_loss.1} parent=61 // pred_check_branch
          %371 = sbr.rel (%p369) target = $region78
        $region77: #{angular_penalty_sm_loss.1} parent=61 // pred_region
          %v372 = vlaneseq
          %v373 = vshrl.u32 %v372, 7
          %v374 = vlaneseq
          %v375 = vand.u32 %v374, 127
          %v376 = vmul.u32 %v373, 128
          %v377 = vstv %s353
          %v378 = vadd.s32 %v377, %v376
          %v379 = vadd.s32 %v378, %v375
          %vm380 = vcmp.lt.s32.totalorder %v379, 8
          %v381 = vsel %vm380, %v351, 0.0
          %v382 = vld [vmem:[#allocation2] sm:$0x1]
          %v383 = vrot.slane %v381, 4
          %v384 = vadd.f32 %v381, %v383
          %v385 = vrot.slane %v384, 2
          %v386 = vadd.f32 %v384, %v385
          %v387 = vrot.slane %v386, 1
          %v388 = vadd.f32 %v386, %v387
          %v389 = vadd.f32 %v382, %v388
          %390 = vst [vmem:[#allocation2] sm:$0x1] %v389
        $region78: #{angular_penalty_sm_loss.1} parent=61 // pred_fallthru
          _
        // Predicated region
        $region79: #{angular_penalty_sm_loss.1} parent=61 // pred_check
          %p391 = pneg %p219
        $region80: #{angular_penalty_sm_loss.1} parent=61 // pred_check_branch
          %393 = sbr.rel (%p391) target = $region82
        $region81: #{angular_penalty_sm_loss.1} parent=61 // pred_region
          %v394 = vld [vmem:[#allocation2] sm:$0x1]
          %v395 = vmul.f32 %v394, 0.125
          %396 = vst [vmem:[%s218] sm:$0x1] %v395
        $region82: #{angular_penalty_sm_loss.1} parent=61 // pred_fallthru
          _
        %p397 = scmp.lt.s32.totalorder %s17, 1
        %s398 = scalar_select %p397, %s17, 1
        %s399 = scalar_lea.vmem %s2, %s398
        // Predicated region
        $region83: #{angular_penalty_sm_loss.1} parent=61 // pred_check
          %p400 = pneg %p99
        $region84: #{angular_penalty_sm_loss.1} parent=61 // pred_check_branch
          %402 = sbr.rel (%p400) target = $region86
        $region85: #{angular_penalty_sm_loss.1} parent=61 // pred_region
          _
        $region86: #{angular_penalty_sm_loss.1} parent=61 // pred_fallthru
          _
      $region62: #{angular_penalty_sm_loss.1} parent=5 // pred_fallthru
        _
      %p403 = scmp.le.s32.totalorder 2, %s8
      // Predicated region
      $region87: #{angular_penalty_sm_loss.1} parent=5 // pred_check
        %p404 = pneg %p403
      $region88: #{angular_penalty_sm_loss.1} parent=5 // pred_check_branch
        %406 = sbr.rel (%p404) target = $region90
      $region89: #{angular_penalty_sm_loss.1} parent=5 // pred_region
        %s407 = ssub.s32 %s8, 2
        // Predicated region
        $region91: #{angular_penalty_sm_loss.1} parent=89 // pred_check
          %p408 = pneg %p105
        $region92: #{angular_penalty_sm_loss.1} parent=89 // pred_check_branch
          %410 = sbr.rel (%p408) target = $region94
        $region93: #{angular_penalty_sm_loss.1} parent=89 // pred_region
          %p411 = scmp.lt.s32.totalorder %s19, 1
          %s412 = scalar_select %p411, %s19, 1
          %s413 = scalar_lea.vmem %s2, %s412
        $region94: #{angular_penalty_sm_loss.1} parent=89 // pred_fallthru
          _
      $region90: #{angular_penalty_sm_loss.1} parent=5 // pred_fallthru
        _
    $region6: #{angular_penalty_sm_loss.1} parent=1 // loop_footer
      %s12 = sadd.s32 1, %s8
    $region7: #{angular_penalty_sm_loss.1} parent=1 // loop_footer_branch
      %7 = sbr.rel target = $region3
    $region8: #{angular_penalty_sm_loss.1} parent=1 // loop_exit
      _

</llo_original>
